<compile_context>
chip_gen: v7x
topology: tpu7x:2x2x1
jax: 0.10.0
libtpu: 0.0.40
codegen_flags: <defaults>
</compile_context>

<pallas_src>
import functools
import numpy as np

import jax
import jax.numpy as jnp
from jax import lax
from jax.experimental import pallas as pl
from jax.experimental.pallas import tpu as pltpu

_EPS = 1e-5


# --------------------------------------------------------------------------- #
# Fused Pallas kernel (conv1+BN1+ReLU -> conv2+BN2 + shortcut + add + ReLU)
# --------------------------------------------------------------------------- #
def _make_kernel(stride, Ho, Wo, has_downsample):
    def _body(xs_ref, w1_ref, b1_ref, w2_ref, b2_ref, wd_ref, bd_ref,
              o_ref, y1_ref):
        # xs_ref : (1, H+2, stride, Wq, Cin) bf16 -- phase-split padded input:
        #          xs[0, r, ph, j, c] == x_padded[r, j*stride + ph, c]
        # w1_ref : (9*Cin, C)  bf16   (BN1 scale folded in)
        # b1_ref : (1, C)      f32
        # w2_ref : (9*C, C)    bf16   (BN2 scale folded in)
        # b2_ref : (1, C)      f32
        # wd_ref : (Cin, C)    bf16   (only when has_downsample)
        # bd_ref : (1, C)      f32    (only when has_downsample)
        # o_ref  : (1, Ho, Wo, C) f32
        # y1_ref : (Ho+2, Wo+2, C) bf16 scratch -- padded conv1 output

        # Zero the scratch: its border rows/cols are conv2's zero padding.
        y1_ref[...] = jnp.zeros(y1_ref.shape, y1_ref.dtype)

        def _x_tap(r, dw):
            # Padded column w*stride + dw for all output columns w, as a
            # contiguous slice thanks to the phase-split layout.
            return xs_ref[0, r, dw % stride, pl.ds(dw // stride, Wo), :]

        # ---- conv3x3(stride) + folded BN1 + ReLU -> y1 scratch ------------ #
        def conv1_row(h, carry):
            taps = [_x_tap(h * stride + dh, dw)
                    for dh in range(3) for dw in range(3)]
            col = jnp.concatenate(taps, axis=-1)          # (Wo, 9*Cin) bf16
            y = jnp.dot(col, w1_ref[...], preferred_element_type=jnp.float32)
            y = jnp.maximum(y + b1_ref[...], 0.0)
            y1_ref[h + 1, pl.ds(1, Wo), :] = y.astype(y1_ref.dtype)
            return carry

        lax.fori_loop(0, Ho, conv1_row, 0)

        # ---- conv3x3(1) + folded BN2 + shortcut + add + ReLU -> output ---- #
        def conv2_row(h, carry):
            taps = [y1_ref[h + dh, pl.ds(dw, Wo), :]
                    for dh in range(3) for dw in range(3)]
            col = jnp.concatenate(taps, axis=-1)          # (Wo, 9*C) bf16
            acc = jnp.dot(col, w2_ref[...], preferred_element_type=jnp.float32)
            acc = acc + b2_ref[...]

            # Shortcut input = the (dh=1, dw=1) center tap, i.e. x[h*s, ::s].
            xsc = _x_tap(1 + h * stride, 1)               # (Wo, Cin) bf16
            if has_downsample:
                sc = jnp.dot(xsc, wd_ref[...],
                             preferred_element_type=jnp.float32) + bd_ref[...]
            else:
                sc = xsc.astype(jnp.float32)              # plain VPU add

            o_ref[0, h] = jnp.maximum(acc + sc, 0.0)
            return carry

        lax.fori_loop(0, Ho, conv2_row, 0)

    if has_downsample:
        def kernel(xs_ref, w1_ref, b1_ref, w2_ref, b2_ref, wd_ref, bd_ref,
                   o_ref, y1_ref):
            _body(xs_ref, w1_ref, b1_ref, w2_ref, b2_ref, wd_ref, bd_ref,
                  o_ref, y1_ref)
    else:
        def kernel(xs_ref, w1_ref, b1_ref, w2_ref, b2_ref, o_ref, y1_ref):
            _body(xs_ref, w1_ref, b1_ref, w2_ref, b2_ref, None, None,
                  o_ref, y1_ref)
    return kernel


def _call_fused_block(xs, w1, b1, w2, b2, wd, bd, stride, Ho, Wo):
    N, Hp, S, Wq, Cin = xs.shape
    Cout = w1.shape[1]
    has_down = wd is not None

    in_specs = [
        pl.BlockSpec((1, Hp, S, Wq, Cin), lambda n: (n, 0, 0, 0, 0)),
        pl.BlockSpec((9 * Cin, Cout), lambda n: (0, 0)),
        pl.BlockSpec((1, Cout), lambda n: (0, 0)),
        pl.BlockSpec((9 * Cout, Cout), lambda n: (0, 0)),
        pl.BlockSpec((1, Cout), lambda n: (0, 0)),
    ]
    args = [xs, w1, b1, w2, b2]
    if has_down:
        in_specs += [pl.BlockSpec((Cin, Cout), lambda n: (0, 0)),
                     pl.BlockSpec((1, Cout), lambda n: (0, 0))]
        args += [wd, bd]

    return pl.pallas_call(
        _make_kernel(stride, Ho, Wo, has_down),
        out_shape=jax.ShapeDtypeStruct((N, Ho, Wo, Cout), jnp.float32),
        grid_spec=pltpu.PrefetchScalarGridSpec(
            num_scalar_prefetch=0,
            grid=(N,),
            in_specs=in_specs,
            out_specs=pl.BlockSpec((1, Ho, Wo, Cout), lambda n: (n, 0, 0, 0)),
            scratch_shapes=[pltpu.VMEM((Ho + 2, Wo + 2, Cout), jnp.bfloat16)],
        ),
        compiler_params=pltpu.CompilerParams(
            dimension_semantics=("parallel",),
            vmem_limit_bytes=32 * 1024 * 1024,
        ),
    )(*args)


# --------------------------------------------------------------------------- #
# Wrapper: layout plumbing + BN folding (trace time only)
# --------------------------------------------------------------------------- #
@functools.partial(jax.jit, static_argnames=("stride",))
def residual_block_forward(x_nchw, p, stride):
    """Forward pass of Residual_Block. x_nchw: (N, Cin, H, W) float32."""
    N, Cin, H, W = x_nchw.shape
    Cout = p["w1"].shape[0]
    Ho = (H - 1) // stride + 1
    Wo = (W - 1) // stride + 1

    # NHWC, zero-pad spatial by 1 (conv padding=1), bf16 for the MXU / half DMA.
    x = jnp.transpose(x_nchw, (0, 2, 3, 1))
    xp = jnp.pad(x, ((0, 0), (1, 1), (1, 1), (0, 0))).astype(jnp.bfloat16)

    # Column phase split (same total bytes as xp): xs[n,r,ph,j,c] = xp[n,r,j*s+ph,c]
    # so strided conv taps become contiguous slices inside the kernel.
    Wp = W + 2
    Wq = -(-Wp // stride)
    if Wq * stride != Wp:
        xp = jnp.pad(xp, ((0, 0), (0, 0), (0, Wq * stride - Wp), (0, 0)))
    xs = jnp.transpose(xp.reshape(N, H + 2, Wq, stride, Cin), (0, 1, 3, 2, 4))

    def fold(w_oihw, conv_bias, gamma, beta, mean, var):
        # Fold BN scale into the conv weights, BN shift (+ conv bias) into bias.
        scale = gamma * lax.rsqrt(var + _EPS)
        kh, kw, cin = w_oihw.shape[2], w_oihw.shape[3], w_oihw.shape[1]
        w = jnp.transpose(w_oihw, (2, 3, 1, 0)).reshape(kh * kw * cin, -1)
        w = (w * scale[None, :]).astype(jnp.bfloat16)
        b = ((conv_bias - mean) * scale + beta).reshape(1, -1).astype(jnp.float32)
        return w, b

    w1, b1 = fold(p["w1"], p["b1"], p["bn1_gamma"], p["bn1_beta"],
                  p["bn1_mean"], p["bn1_var"])
    w2, b2 = fold(p["w2"], p["b2"], p["bn2_gamma"], p["bn2_beta"],
                  p["bn2_mean"], p["bn2_var"])

    if "wd" in p:
        zero_b = jnp.zeros((Cout,), jnp.float32)
        wd, bd = fold(p["wd"], zero_b, p["bnd_gamma"], p["bnd_beta"],
                      p["bnd_mean"], p["bnd_var"])        # wd: (Cin, Cout)
    else:
        wd, bd = None, None

    out = _call_fused_block(xs, w1, b1, w2, b2, wd, bd, stride, Ho, Wo)
    return jnp.transpose(out, (0, 3, 1, 2))


# --------------------------------------------------------------------------- #
# Deterministic parameter init (matches nn.Module __init__ shapes)
# --------------------------------------------------------------------------- #
def init_params(key, cin, cout, stride):
    ks = jax.random.split(key, 20)
    p = {
        "w1": 0.1 * jax.random.normal(ks[0], (cout, cin, 3, 3), jnp.float32),
        "b1": 0.1 * jax.random.normal(ks[1], (cout,), jnp.float32),
        "bn1_gamma": 1.0 + 0.1 * jax.random.normal(ks[2], (cout,), jnp.float32),
        "bn1_beta": 0.1 * jax.random.normal(ks[3], (cout,), jnp.float32),
        "bn1_mean": 0.1 * jax.random.normal(ks[4], (cout,), jnp.float32),
        "bn1_var": jax.random.uniform(ks[5], (cout,), jnp.float32, 0.5, 1.5),
        "w2": 0.1 * jax.random.normal(ks[6], (cout, cout, 3, 3), jnp.float32),
        "b2": 0.1 * jax.random.normal(ks[7], (cout,), jnp.float32),
        "bn2_gamma": 1.0 + 0.1 * jax.random.normal(ks[8], (cout,), jnp.float32),
        "bn2_beta": 0.1 * jax.random.normal(ks[9], (cout,), jnp.float32),
        "bn2_mean": 0.1 * jax.random.normal(ks[10], (cout,), jnp.float32),
        "bn2_var": jax.random.uniform(ks[11], (cout,), jnp.float32, 0.5, 1.5),
    }
    if cin != cout or stride != 1:
        p.update({
            "wd": 0.1 * jax.random.normal(ks[12], (cout, cin, 1, 1), jnp.float32),
            "bnd_gamma": 1.0 + 0.1 * jax.random.normal(ks[13], (cout,), jnp.float32),
            "bnd_beta": 0.1 * jax.random.normal(ks[14], (cout,), jnp.float32),
            "bnd_mean": 0.1 * jax.random.normal(ks[15], (cout,), jnp.float32),
            "bnd_var": jax.random.uniform(ks[16], (cout,), jnp.float32, 0.5, 1.5),
        })
    return p


# --------------------------------------------------------------------------- #
# Pure-JAX f32 reference (for verification)
# --------------------------------------------------------------------------- #
def reference_forward(x, p, stride):
    def bn(z, g, b, m, v):
        return ((z - m[None, :, None, None]) / jnp.sqrt(v[None, :, None, None] + _EPS)
                * g[None, :, None, None] + b[None, :, None, None])

    def conv(z, w, b, s, pad):
        y = lax.conv_general_dilated(
            z, w, (s, s), [(pad, pad), (pad, pad)],
            dimension_numbers=("NCHW", "OIHW", "NCHW"),
            precision=lax.Precision.HIGHEST)
        if b is not None:
            y = y + b[None, :, None, None]
        return y

    out = conv(x, p["w1"], p["b1"], stride, 1)
    out = jax.nn.relu(bn(out, p["bn1_gamma"], p["bn1_beta"], p["bn1_mean"], p["bn1_var"]))
    out = conv(out, p["w2"], p["b2"], 1, 1)
    out = bn(out, p["bn2_gamma"], p["bn2_beta"], p["bn2_mean"], p["bn2_var"])
    sc = x
    if "wd" in p:
        sc = conv(x, p["wd"], None, stride, 0)
        sc = bn(sc, p["bnd_gamma"], p["bnd_beta"], p["bnd_mean"], p["bnd_var"])
    return jax.nn.relu(out + sc)


# --------------------------------------------------------------------------- #
if __name__ == "__main__":
    key = jax.random.PRNGKey(0)
    kx, kp1, kp2 = jax.random.split(key, 3)

    # bf16 matmul operands (f32 accumulation/epilogue) vs f32 reference:
    TOL = dict(atol=5e-2, rtol=5e-2)

    # Case 1: downsample shortcut active (Cin != Cout, stride 2)
    N, Cin, Cout, H, W, stride = 2, 4, 8, 16, 16, 2
    x = jax.random.normal(kx, (N, Cin, H, W), jnp.float32)
    params = init_params(kp1, Cin, Cout, stride)
    out = jax.block_until_ready(residual_block_forward(x, params, stride))
    ref = reference_forward(x, params, stride)
    assert out.shape == ref.shape == (N, Cout, H // stride, W // stride)
    np.testing.assert_allclose(np.asarray(out), np.asarray(ref), **TOL)

    # Case 2: identity shortcut (Cin == Cout, stride 1)
    params2 = init_params(kp2, Cout, Cout, 1)
    x2 = jnp.asarray(ref)  # reuse previous output as a deterministic input
    out2 = jax.block_until_ready(residual_block_forward(x2, params2, 1))
    ref2 = reference_forward(x2, params2, 1)
    assert out2.shape == ref2.shape == x2.shape
    np.testing.assert_allclose(np.asarray(out2), np.asarray(ref2), **TOL)

    print("KERNEL_OK")
</pallas_src>

<mosaic_0001>
module attributes {stable_mosaic.version = 11 : i64} {
  func.func @kernel(%arg0: i32, %arg1: memref<1x18x2x9x4xbf16, #tpu.memory_space<vmem>>, %arg2: memref<36x8xbf16, #tpu.memory_space<vmem>>, %arg3: memref<1x8xf32, #tpu.memory_space<vmem>>, %arg4: memref<72x8xbf16, #tpu.memory_space<vmem>>, %arg5: memref<1x8xf32, #tpu.memory_space<vmem>>, %arg6: memref<4x8xbf16, #tpu.memory_space<vmem>>, %arg7: memref<1x8xf32, #tpu.memory_space<vmem>>, %arg8: memref<1x8x8x8xf32, #tpu.memory_space<vmem>>, %arg9: memref<10x10x8xbf16, #tpu.memory_space<vmem>>) attributes {dimension_semantics = [#tpu.dimension_semantics<parallel>], iteration_bounds = array<i64: 2>, scalar_prefetch = 0 : i64, scratch_operands = 1 : i64, tpu.core_type = #tpu.core_type<tc>, window_params = [{transform_indices = @transform_0, window_bounds = array<i64: 1, 18, 2, 9, 4>}, {pipeline_mode = #tpu.pipeline_mode<synchronous>, transform_indices = @transform_1, window_bounds = array<i64: 36, 8>}, {pipeline_mode = #tpu.pipeline_mode<synchronous>, transform_indices = @transform_2, window_bounds = array<i64: 1, 8>}, {pipeline_mode = #tpu.pipeline_mode<synchronous>, transform_indices = @transform_3, window_bounds = array<i64: 72, 8>}, {pipeline_mode = #tpu.pipeline_mode<synchronous>, transform_indices = @transform_4, window_bounds = array<i64: 1, 8>}, {pipeline_mode = #tpu.pipeline_mode<synchronous>, transform_indices = @transform_5, window_bounds = array<i64: 4, 8>}, {pipeline_mode = #tpu.pipeline_mode<synchronous>, transform_indices = @transform_6, window_bounds = array<i64: 1, 8>}, {transform_indices = @transform_7, window_bounds = array<i64: 1, 8, 8, 8>}]} {
    %cst = arith.constant 0.000000e+00 : bf16
    %0 = vector.broadcast %cst : bf16 to vector<10x10x8xbf16>
    %c0 = arith.constant 0 : index
    %c0_0 = arith.constant 0 : index
    %c0_1 = arith.constant 0 : index
    %1 = vector.load %arg9[%c0, %c0_0, %c0_1] : memref<10x10x8xbf16, #tpu.memory_space<vmem>>, vector<10x10x8xbf16>
    tpu.vector_store %arg9[%c0, %c0_0, %c0_1], %0 {strides = array<i32>} : memref<10x10x8xbf16, #tpu.memory_space<vmem>>, vector<10x10x8xbf16>,
    %c0_i32 = arith.constant 0 : i32
    %c8_i32 = arith.constant 8 : i32
    %2 = arith.addi %c0_i32, %c8_i32 : i32
    %c1_i32 = arith.constant 1 : i32
    scf.for %arg10 = %c0_i32 to %2 step %c1_i32  : i32 {
      %c2_i32 = arith.constant 2 : i32
      %4 = arith.muli %arg10, %c2_i32 : i32
      %c0_i32_7 = arith.constant 0 : i32
      %5 = arith.addi %4, %c0_i32_7 : i32
      %c0_8 = arith.constant 0 : index
      %6 = arith.index_cast %5 : i32 to index
      %c0_9 = arith.constant 0 : index
      %c0_10 = arith.constant 0 : index
      %c0_11 = arith.constant 0 : index
      %7 = vector.load %arg1[%c0_8, %6, %c0_9, %c0_10, %c0_11] : memref<1x18x2x9x4xbf16, #tpu.memory_space<vmem>>, vector<1x1x1x8x4xbf16>
      %8 = vector.shape_cast %7 : vector<1x1x1x8x4xbf16> to vector<8x4xbf16>
      %c2_i32_12 = arith.constant 2 : i32
      %9 = arith.muli %arg10, %c2_i32_12 : i32
      %c0_i32_13 = arith.constant 0 : i32
      %10 = arith.addi %9, %c0_i32_13 : i32
      %c0_14 = arith.constant 0 : index
      %11 = arith.index_cast %10 : i32 to index
      %c1 = arith.constant 1 : index
      %c0_15 = arith.constant 0 : index
      %c0_16 = arith.constant 0 : index
      %12 = vector.load %arg1[%c0_14, %11, %c1, %c0_15, %c0_16] : memref<1x18x2x9x4xbf16, #tpu.memory_space<vmem>>, vector<1x1x1x8x4xbf16>
      %13 = vector.shape_cast %12 : vector<1x1x1x8x4xbf16> to vector<8x4xbf16>
      %c2_i32_17 = arith.constant 2 : i32
      %14 = arith.muli %arg10, %c2_i32_17 : i32
      %c0_i32_18 = arith.constant 0 : i32
      %15 = arith.addi %14, %c0_i32_18 : i32
      %c0_19 = arith.constant 0 : index
      %16 = arith.index_cast %15 : i32 to index
      %c0_20 = arith.constant 0 : index
      %c1_21 = arith.constant 1 : index
      %c0_22 = arith.constant 0 : index
      %17 = vector.load %arg1[%c0_19, %16, %c0_20, %c1_21, %c0_22] : memref<1x18x2x9x4xbf16, #tpu.memory_space<vmem>>, vector<1x1x1x8x4xbf16>
      %18 = vector.shape_cast %17 : vector<1x1x1x8x4xbf16> to vector<8x4xbf16>
      %c2_i32_23 = arith.constant 2 : i32
      %19 = arith.muli %arg10, %c2_i32_23 : i32
      %c1_i32_24 = arith.constant 1 : i32
      %20 = arith.addi %19, %c1_i32_24 : i32
      %c0_25 = arith.constant 0 : index
      %21 = arith.index_cast %20 : i32 to index
      %c0_26 = arith.constant 0 : index
      %c0_27 = arith.constant 0 : index
      %c0_28 = arith.constant 0 : index
      %22 = vector.load %arg1[%c0_25, %21, %c0_26, %c0_27, %c0_28] : memref<1x18x2x9x4xbf16, #tpu.memory_space<vmem>>, vector<1x1x1x8x4xbf16>
      %23 = vector.shape_cast %22 : vector<1x1x1x8x4xbf16> to vector<8x4xbf16>
      %c2_i32_29 = arith.constant 2 : i32
      %24 = arith.muli %arg10, %c2_i32_29 : i32
      %c1_i32_30 = arith.constant 1 : i32
      %25 = arith.addi %24, %c1_i32_30 : i32
      %c0_31 = arith.constant 0 : index
      %26 = arith.index_cast %25 : i32 to index
      %c1_32 = arith.constant 1 : index
      %c0_33 = arith.constant 0 : index
      %c0_34 = arith.constant 0 : index
      %27 = vector.load %arg1[%c0_31, %26, %c1_32, %c0_33, %c0_34] : memref<1x18x2x9x4xbf16, #tpu.memory_space<vmem>>, vector<1x1x1x8x4xbf16>
      %28 = vector.shape_cast %27 : vector<1x1x1x8x4xbf16> to vector<8x4xbf16>
      %c2_i32_35 = arith.constant 2 : i32
      %29 = arith.muli %arg10, %c2_i32_35 : i32
      %c1_i32_36 = arith.constant 1 : i32
      %30 = arith.addi %29, %c1_i32_36 : i32
      %c0_37 = arith.constant 0 : index
      %31 = arith.index_cast %30 : i32 to index
      %c0_38 = arith.constant 0 : index
      %c1_39 = arith.constant 1 : index
      %c0_40 = arith.constant 0 : index
      %32 = vector.load %arg1[%c0_37, %31, %c0_38, %c1_39, %c0_40] : memref<1x18x2x9x4xbf16, #tpu.memory_space<vmem>>, vector<1x1x1x8x4xbf16>
      %33 = vector.shape_cast %32 : vector<1x1x1x8x4xbf16> to vector<8x4xbf16>
      %c2_i32_41 = arith.constant 2 : i32
      %34 = arith.muli %arg10, %c2_i32_41 : i32
      %c2_i32_42 = arith.constant 2 : i32
      %35 = arith.addi %34, %c2_i32_42 : i32
      %c0_43 = arith.constant 0 : index
      %36 = arith.index_cast %35 : i32 to index
      %c0_44 = arith.constant 0 : index
      %c0_45 = arith.constant 0 : index
      %c0_46 = arith.constant 0 : index
      %37 = vector.load %arg1[%c0_43, %36, %c0_44, %c0_45, %c0_46] : memref<1x18x2x9x4xbf16, #tpu.memory_space<vmem>>, vector<1x1x1x8x4xbf16>
      %38 = vector.shape_cast %37 : vector<1x1x1x8x4xbf16> to vector<8x4xbf16>
      %c2_i32_47 = arith.constant 2 : i32
      %39 = arith.muli %arg10, %c2_i32_47 : i32
      %c2_i32_48 = arith.constant 2 : i32
      %40 = arith.addi %39, %c2_i32_48 : i32
      %c0_49 = arith.constant 0 : index
      %41 = arith.index_cast %40 : i32 to index
      %c1_50 = arith.constant 1 : index
      %c0_51 = arith.constant 0 : index
      %c0_52 = arith.constant 0 : index
      %42 = vector.load %arg1[%c0_49, %41, %c1_50, %c0_51, %c0_52] : memref<1x18x2x9x4xbf16, #tpu.memory_space<vmem>>, vector<1x1x1x8x4xbf16>
      %43 = vector.shape_cast %42 : vector<1x1x1x8x4xbf16> to vector<8x4xbf16>
      %c2_i32_53 = arith.constant 2 : i32
      %44 = arith.muli %arg10, %c2_i32_53 : i32
      %c2_i32_54 = arith.constant 2 : i32
      %45 = arith.addi %44, %c2_i32_54 : i32
      %c0_55 = arith.constant 0 : index
      %46 = arith.index_cast %45 : i32 to index
      %c0_56 = arith.constant 0 : index
      %c1_57 = arith.constant 1 : index
      %c0_58 = arith.constant 0 : index
      %47 = vector.load %arg1[%c0_55, %46, %c0_56, %c1_57, %c0_58] : memref<1x18x2x9x4xbf16, #tpu.memory_space<vmem>>, vector<1x1x1x8x4xbf16>
      %48 = vector.shape_cast %47 : vector<1x1x1x8x4xbf16> to vector<8x4xbf16>
      %49 = tpu.concatenate %8, %13, %18, %23, %28, %33, %38, %43, %48 in 1 : vector<8x4xbf16>, vector<8x4xbf16>, vector<8x4xbf16>, vector<8x4xbf16>, vector<8x4xbf16>, vector<8x4xbf16>, vector<8x4xbf16>, vector<8x4xbf16>, vector<8x4xbf16> -> vector<8x36xbf16>
      %c0_59 = arith.constant 0 : index
      %c0_60 = arith.constant 0 : index
      %50 = vector.load %arg2[%c0_59, %c0_60] : memref<36x8xbf16, #tpu.memory_space<vmem>>, vector<36x8xbf16>
      %cst_61 = arith.constant dense<0.000000e+00> : vector<8x8xf32>
      %51 = tpu.matmul %49, %50, %cst_61 {dimension_numbers = #tpu.dot_dimension_numbers<[1], [0], [0], [1], [0, 0, 1, 1], [], []>} : vector<8x36xbf16>, vector<36x8xbf16>, vector<8x8xf32> -> vector<8x8xf32>
      %c0_62 = arith.constant 0 : index
      %c0_63 = arith.constant 0 : index
      %52 = vector.load %arg3[%c0_62, %c0_63] : memref<1x8xf32, #tpu.memory_space<vmem>>, vector<1x8xf32>
      %53 = vector.broadcast %52 : vector<1x8xf32> to vector<8x8xf32>
      %54 = arith.addf %51, %53 : vector<8x8xf32>
      %cst_64 = arith.constant 0.000000e+00 : f32
      %55 = vector.broadcast %cst_64 : f32 to vector<8x8xf32>
      %56 = arith.maximumf %54, %55 : vector<8x8xf32>
      %57 = arith.truncf %56 : vector<8x8xf32> to vector<8x8xbf16>
      %c1_i32_65 = arith.constant 1 : i32
      %58 = arith.addi %arg10, %c1_i32_65 : i32
      %59 = arith.index_cast %58 : i32 to index
      %c1_66 = arith.constant 1 : index
      %c0_67 = arith.constant 0 : index
      %60 = vector.load %arg9[%59, %c1_66, %c0_67] : memref<10x10x8xbf16, #tpu.memory_space<vmem>>, vector<1x8x8xbf16>
      %61 = vector.shape_cast %60 : vector<1x8x8xbf16> to vector<8x8xbf16>
      %62 = vector.shape_cast %57 : vector<8x8xbf16> to vector<1x8x8xbf16>
      tpu.vector_store %arg9[%59, %c1_66, %c0_67], %62 {strides = array<i32>} : memref<10x10x8xbf16, #tpu.memory_space<vmem>>, vector<1x8x8xbf16>,
    }
    %c8_i32_2 = arith.constant 8 : i32
    %c0_i32_3 = arith.constant 0 : i32
    %c8_i32_4 = arith.constant 8 : i32
    %3 = arith.addi %c0_i32_3, %c8_i32_4 : i32
    %c1_i32_5 = arith.constant 1 : i32
    scf.for %arg10 = %c0_i32_3 to %3 step %c1_i32_5  : i32 {
      %c0_i32_7 = arith.constant 0 : i32
      %4 = arith.addi %arg10, %c0_i32_7 : i32
      %5 = arith.index_cast %4 : i32 to index
      %c0_8 = arith.constant 0 : index
      %c0_9 = arith.constant 0 : index
      %6 = vector.load %arg9[%5, %c0_8, %c0_9] : memref<10x10x8xbf16, #tpu.memory_space<vmem>>, vector<1x8x8xbf16>
      %7 = vector.shape_cast %6 : vector<1x8x8xbf16> to vector<8x8xbf16>
      %c0_i32_10 = arith.constant 0 : i32
      %8 = arith.addi %arg10, %c0_i32_10 : i32
      %9 = arith.index_cast %8 : i32 to index
      %c1 = arith.constant 1 : index
      %c0_11 = arith.constant 0 : index
      %10 = vector.load %arg9[%9, %c1, %c0_11] : memref<10x10x8xbf16, #tpu.memory_space<vmem>>, vector<1x8x8xbf16>
      %11 = vector.shape_cast %10 : vector<1x8x8xbf16> to vector<8x8xbf16>
      %c0_i32_12 = arith.constant 0 : i32
      %12 = arith.addi %arg10, %c0_i32_12 : i32
      %13 = arith.index_cast %12 : i32 to index
      %c2 = arith.constant 2 : index
      %c0_13 = arith.constant 0 : index
      %14 = vector.load %arg9[%13, %c2, %c0_13] : memref<10x10x8xbf16, #tpu.memory_space<vmem>>, vector<1x8x8xbf16>
      %15 = vector.shape_cast %14 : vector<1x8x8xbf16> to vector<8x8xbf16>
      %c1_i32_14 = arith.constant 1 : i32
      %16 = arith.addi %arg10, %c1_i32_14 : i32
      %17 = arith.index_cast %16 : i32 to index
      %c0_15 = arith.constant 0 : index
      %c0_16 = arith.constant 0 : index
      %18 = vector.load %arg9[%17, %c0_15, %c0_16] : memref<10x10x8xbf16, #tpu.memory_space<vmem>>, vector<1x8x8xbf16>
      %19 = vector.shape_cast %18 : vector<1x8x8xbf16> to vector<8x8xbf16>
      %c1_i32_17 = arith.constant 1 : i32
      %20 = arith.addi %arg10, %c1_i32_17 : i32
      %21 = arith.index_cast %20 : i32 to index
      %c1_18 = arith.constant 1 : index
      %c0_19 = arith.constant 0 : index
      %22 = vector.load %arg9[%21, %c1_18, %c0_19] : memref<10x10x8xbf16, #tpu.memory_space<vmem>>, vector<1x8x8xbf16>
      %23 = vector.shape_cast %22 : vector<1x8x8xbf16> to vector<8x8xbf16>
      %c1_i32_20 = arith.constant 1 : i32
      %24 = arith.addi %arg10, %c1_i32_20 : i32
      %25 = arith.index_cast %24 : i32 to index
      %c2_21 = arith.constant 2 : index
      %c0_22 = arith.constant 0 : index
      %26 = vector.load %arg9[%25, %c2_21, %c0_22] : memref<10x10x8xbf16, #tpu.memory_space<vmem>>, vector<1x8x8xbf16>
      %27 = vector.shape_cast %26 : vector<1x8x8xbf16> to vector<8x8xbf16>
      %c2_i32 = arith.constant 2 : i32
      %28 = arith.addi %arg10, %c2_i32 : i32
      %29 = arith.index_cast %28 : i32 to index
      %c0_23 = arith.constant 0 : index
      %c0_24 = arith.constant 0 : index
      %30 = vector.load %arg9[%29, %c0_23, %c0_24] : memref<10x10x8xbf16, #tpu.memory_space<vmem>>, vector<1x8x8xbf16>
      %31 = vector.shape_cast %30 : vector<1x8x8xbf16> to vector<8x8xbf16>
      %c2_i32_25 = arith.constant 2 : i32
      %32 = arith.addi %arg10, %c2_i32_25 : i32
      %33 = arith.index_cast %32 : i32 to index
      %c1_26 = arith.constant 1 : index
      %c0_27 = arith.constant 0 : index
      %34 = vector.load %arg9[%33, %c1_26, %c0_27] : memref<10x10x8xbf16, #tpu.memory_space<vmem>>, vector<1x8x8xbf16>
      %35 = vector.shape_cast %34 : vector<1x8x8xbf16> to vector<8x8xbf16>
      %c2_i32_28 = arith.constant 2 : i32
      %36 = arith.addi %arg10, %c2_i32_28 : i32
      %37 = arith.index_cast %36 : i32 to index
      %c2_29 = arith.constant 2 : index
      %c0_30 = arith.constant 0 : index
      %38 = vector.load %arg9[%37, %c2_29, %c0_30] : memref<10x10x8xbf16, #tpu.memory_space<vmem>>, vector<1x8x8xbf16>
      %39 = vector.shape_cast %38 : vector<1x8x8xbf16> to vector<8x8xbf16>
      %40 = tpu.concatenate %7, %11, %15, %19, %23, %27, %31, %35, %39 in 1 : vector<8x8xbf16>, vector<8x8xbf16>, vector<8x8xbf16>, vector<8x8xbf16>, vector<8x8xbf16>, vector<8x8xbf16>, vector<8x8xbf16>, vector<8x8xbf16>, vector<8x8xbf16> -> vector<8x72xbf16>
      %c0_31 = arith.constant 0 : index
      %c0_32 = arith.constant 0 : index
      %41 = vector.load %arg4[%c0_31, %c0_32] : memref<72x8xbf16, #tpu.memory_space<vmem>>, vector<72x8xbf16>
      %cst_33 = arith.constant dense<0.000000e+00> : vector<8x8xf32>
      %42 = tpu.matmul %40, %41, %cst_33 {dimension_numbers = #tpu.dot_dimension_numbers<[1], [0], [0], [1], [0, 0, 1, 1], [], []>} : vector<8x72xbf16>, vector<72x8xbf16>, vector<8x8xf32> -> vector<8x8xf32>
      %c0_34 = arith.constant 0 : index
      %c0_35 = arith.constant 0 : index
      %43 = vector.load %arg5[%c0_34, %c0_35] : memref<1x8xf32, #tpu.memory_space<vmem>>, vector<1x8xf32>
      %44 = vector.broadcast %43 : vector<1x8xf32> to vector<8x8xf32>
      %45 = arith.addf %42, %44 : vector<8x8xf32>
      %c2_i32_36 = arith.constant 2 : i32
      %46 = arith.muli %arg10, %c2_i32_36 : i32
      %c1_i32_37 = arith.constant 1 : i32
      %47 = arith.addi %c1_i32_37, %46 : i32
      %c0_38 = arith.constant 0 : index
      %48 = arith.index_cast %47 : i32 to index
      %c1_39 = arith.constant 1 : index
      %c0_40 = arith.constant 0 : index
      %c0_41 = arith.constant 0 : index
      %49 = vector.load %arg1[%c0_38, %48, %c1_39, %c0_40, %c0_41] : memref<1x18x2x9x4xbf16, #tpu.memory_space<vmem>>, vector<1x1x1x8x4xbf16>
      %50 = vector.shape_cast %49 : vector<1x1x1x8x4xbf16> to vector<8x4xbf16>
      %c0_42 = arith.constant 0 : index
      %c0_43 = arith.constant 0 : index
      %51 = vector.load %arg6[%c0_42, %c0_43] : memref<4x8xbf16, #tpu.memory_space<vmem>>, vector<4x8xbf16>
      %cst_44 = arith.constant dense<0.000000e+00> : vector<8x8xf32>
      %52 = tpu.matmul %50, %51, %cst_44 {dimension_numbers = #tpu.dot_dimension_numbers<[1], [0], [0], [1], [0, 0, 1, 1], [], []>} : vector<8x4xbf16>, vector<4x8xbf16>, vector<8x8xf32> -> vector<8x8xf32>
      %c0_45 = arith.constant 0 : index
      %c0_46 = arith.constant 0 : index
      %53 = vector.load %arg7[%c0_45, %c0_46] : memref<1x8xf32, #tpu.memory_space<vmem>>, vector<1x8xf32>
      %54 = vector.broadcast %53 : vector<1x8xf32> to vector<8x8xf32>
      %55 = arith.addf %52, %54 : vector<8x8xf32>
      %56 = arith.addf %45, %55 : vector<8x8xf32>
      %cst_47 = arith.constant 0.000000e+00 : f32
      %57 = vector.broadcast %cst_47 : f32 to vector<8x8xf32>
      %58 = arith.maximumf %56, %57 : vector<8x8xf32>
      %c0_48 = arith.constant 0 : index
      %59 = arith.index_cast %arg10 : i32 to index
      %c0_49 = arith.constant 0 : index
      %c0_50 = arith.constant 0 : index
      %60 = vector.load %arg8[%c0_48, %59, %c0_49, %c0_50] : memref<1x8x8x8xf32, #tpu.memory_space<vmem>>, vector<1x1x8x8xf32>
      %61 = vector.shape_cast %60 : vector<1x1x8x8xf32> to vector<8x8xf32>
      %62 = vector.shape_cast %58 : vector<8x8xf32> to vector<1x1x8x8xf32>
      tpu.vector_store %arg8[%c0_48, %59, %c0_49, %c0_50], %62 {strides = array<i32>} : memref<1x8x8x8xf32, #tpu.memory_space<vmem>>, vector<1x1x8x8xf32>,
    }
    %c8_i32_6 = arith.constant 8 : i32
    return
  }
  func.func @transform_0(%arg0: i32) -> (i32, i32, i32, i32, i32) {
    %c0_i32 = arith.constant 0 : i32
    %c0_i32_0 = arith.constant 0 : i32
    %c0_i32_1 = arith.constant 0 : i32
    %c0_i32_2 = arith.constant 0 : i32
    %c0_i32_3 = arith.constant 0 : i32
    return %arg0, %c0_i32, %c0_i32_0, %c0_i32_1, %c0_i32_2 : i32, i32, i32, i32, i32
  }
  func.func @transform_1(%arg0: i32) -> (i32, i32) {
    %c0_i32 = arith.constant 0 : i32
    %c0_i32_0 = arith.constant 0 : i32
    %c0_i32_1 = arith.constant 0 : i32
    return %c0_i32, %c0_i32_0 : i32, i32
  }
  func.func @transform_2(%arg0: i32) -> (i32, i32) {
    %c0_i32 = arith.constant 0 : i32
    %c0_i32_0 = arith.constant 0 : i32
    %c0_i32_1 = arith.constant 0 : i32
    return %c0_i32, %c0_i32_0 : i32, i32
  }
  func.func @transform_3(%arg0: i32) -> (i32, i32) {
    %c0_i32 = arith.constant 0 : i32
    %c0_i32_0 = arith.constant 0 : i32
    %c0_i32_1 = arith.constant 0 : i32
    return %c0_i32, %c0_i32_0 : i32, i32
  }
  func.func @transform_4(%arg0: i32) -> (i32, i32) {
    %c0_i32 = arith.constant 0 : i32
    %c0_i32_0 = arith.constant 0 : i32
    %c0_i32_1 = arith.constant 0 : i32
    return %c0_i32, %c0_i32_0 : i32, i32
  }
  func.func @transform_5(%arg0: i32) -> (i32, i32) {
    %c0_i32 = arith.constant 0 : i32
    %c0_i32_0 = arith.constant 0 : i32
    %c0_i32_1 = arith.constant 0 : i32
    return %c0_i32, %c0_i32_0 : i32, i32
  }
  func.func @transform_6(%arg0: i32) -> (i32, i32) {
    %c0_i32 = arith.constant 0 : i32
    %c0_i32_0 = arith.constant 0 : i32
    %c0_i32_1 = arith.constant 0 : i32
    return %c0_i32, %c0_i32_0 : i32, i32
  }
  func.func @transform_7(%arg0: i32) -> (i32, i32, i32, i32) {
    %c0_i32 = arith.constant 0 : i32
    %c0_i32_0 = arith.constant 0 : i32
    %c0_i32_1 = arith.constant 0 : i32
    %c0_i32_2 = arith.constant 0 : i32
    return %arg0, %c0_i32, %c0_i32_0, %c0_i32_1 : i32, i32, i32, i32
  }
}

</mosaic_0001>

<llo_original>
// kernel: residual_block_forward.1
$region0: #{residual_block_forward.1}
  #allocation0 [shape = 'u32[]', space=smem, size = 0x4, offset = 0x4, fixed_abs, tag = 'smem constant byte address 0x4 - core index']
  #allocation1 [shape = 'u32[144,128]{1,0:T(1,128)}', space=vmem, size = 0x12000, scoped, tag = 'internal scratch']
  #allocation2 [shape = 'bf16[10,10,8]{2,1,0:T(8,128)(2,1)}', space=vmem, size = 0xa000, scoped, tag = 'scratch operand']
  %s0 = inlined_call_operand.vmem [shape: bf16[2,18,2,9,4], index: 0, kind: input, shape index: {}]
  %s1 = inlined_call_operand.vmem [shape: bf16[36,8], index: 1, kind: input, shape index: {}]
  %s2 = inlined_call_operand.vmem [shape: f32[1,8], index: 2, kind: input, shape index: {}]
  %s3 = inlined_call_operand.vmem [shape: bf16[72,8], index: 3, kind: input, shape index: {}]
  %s4 = inlined_call_operand.vmem [shape: f32[1,8], index: 4, kind: input, shape index: {}]
  %s5 = inlined_call_operand.vmem [shape: bf16[4,8], index: 5, kind: input, shape index: {}]
  %s6 = inlined_call_operand.vmem [shape: f32[1,8], index: 6, kind: input, shape index: {}]
  %s7 = inlined_call_operand.vmem [shape: f32[2,8,8,8], index: 7, kind: output, shape index: {}]
  %s8 = sld [smem:[#allocation0]]
  $region75: #{residual_block_forward.1} parent=0
    _
  %s10 = ssub.s32 1, %s8
  %s11 = scalar_select 0, %s10, %s8
  loop: start=0, step=1, limit=4
  $region2: #{residual_block_forward.1} parent=0 // loop_pre_header
    _
  $region3: #{residual_block_forward.1} parent=0 // loop_header
    %s13 = sphi 0, %s17
    %p14 = scmp.ge.s32.totalorder %s13, 4
    %s23 = sphi 0, %s25
    %s26 = sphi 0, %s23
    %s27 = sphi 0, %s26
    %s43 = sphi 0, %s27
    %s47 = sphi 0, %s47
    %s49 = sphi 0, %s47
    %s50 = sphi 0, %s49
    %s64 = sphi 0, %s50
    %s68 = sphi 0, %s68
    %s70 = sphi 0, %s68
    %s71 = sphi 0, %s70
    %s85 = sphi 0, %s71
    %s89 = sphi 0, %s89
    %s91 = sphi 0, %s89
    %s92 = sphi 0, %s91
    %s106 = sphi 0, %s92
    %s110 = sphi 0, %s110
    %s112 = sphi 0, %s110
    %s113 = sphi 0, %s112
    %s127 = sphi 0, %s113
    %s131 = sphi 0, %s131
    %s133 = sphi 0, %s131
    %s134 = sphi 0, %s133
    %s148 = sphi 0, %s134
    %s152 = sphi 0, %s152
    %s154 = sphi 0, %s152
    %s155 = sphi 0, %s154
    %s169 = sphi 0, %s155
    %s175 = sphi 0, %s177
    %s178 = sphi 0, %s175
    %s179 = sphi 0, %s178
    %s195 = sphi 0, %s179
  $region4: #{residual_block_forward.1} parent=0 // loop_header_branch
    %16 = sbr.rel (%p14) target = $region8
  $region5: #{residual_block_forward.1} parent=0 // loop_body
    %s18 = ssub.s32 %s13, 1
    %s19 = ssub.s32 %s13, 2
    %s20 = sadd.s32 %s13, 1
    %s21 = ssub.s32 %s13, %s20
    %p22 = scmp.eq.s32.totalorder %s21, 0
    %s24 = sadd.s32 %s23, 1
    %s25 = scalar_select %p22, %s23, %s24
    %p28 = pneg %p22
    %p29 = scmp.eq.s32.totalorder %s13, 1
    %p30 = por %p28, %p29
    %p31 = scmp.ne.s32.totalorder %s23, %s26
    %p32 = scmp.eq.s32.totalorder %s13, 0
    %p33 = por %p31, %p32
    %p34 = scmp.ne.s32.totalorder %s23, %s26
    %p35 = scmp.eq.s32.totalorder %s18, 1
    %p36 = por %p34, %p35
    %p37 = scmp.ne.s32.totalorder %s26, %s27
    %p38 = scmp.eq.s32.totalorder %s18, 0
    %p39 = por %p37, %p38
    %p40 = scmp.ne.s32.totalorder %s26, %s27
    %p41 = scmp.eq.s32.totalorder %s19, 1
    %p42 = por %p40, %p41
    %p44 = scmp.ne.s32.totalorder %s27, %s43
    %p45 = scmp.eq.s32.totalorder %s19, 0
    %p46 = por %p44, %p45
    %s48 = sadd.s32 %s47, 1
    %p51 = scmp.eq.s32.totalorder %s13, 1
    %p52 = scmp.ne.s32.totalorder %s47, %s49
    %p53 = scmp.eq.s32.totalorder %s13, 0
    %p54 = por %p52, %p53
    %p55 = scmp.ne.s32.totalorder %s47, %s49
    %p56 = scmp.eq.s32.totalorder %s18, 1
    %p57 = por %p55, %p56
    %p58 = scmp.ne.s32.totalorder %s49, %s50
    %p59 = scmp.eq.s32.totalorder %s18, 0
    %p60 = por %p58, %p59
    %p61 = scmp.ne.s32.totalorder %s49, %s50
    %p62 = scmp.eq.s32.totalorder %s19, 1
    %p63 = por %p61, %p62
    %p65 = scmp.ne.s32.totalorder %s50, %s64
    %p66 = scmp.eq.s32.totalorder %s19, 0
    %p67 = por %p65, %p66
    %s69 = sadd.s32 %s68, 1
    %p72 = scmp.eq.s32.totalorder %s13, 1
    %p73 = scmp.ne.s32.totalorder %s68, %s70
    %p74 = scmp.eq.s32.totalorder %s13, 0
    %p75 = por %p73, %p74
    %p76 = scmp.ne.s32.totalorder %s68, %s70
    %p77 = scmp.eq.s32.totalorder %s18, 1
    %p78 = por %p76, %p77
    %p79 = scmp.ne.s32.totalorder %s70, %s71
    %p80 = scmp.eq.s32.totalorder %s18, 0
    %p81 = por %p79, %p80
    %p82 = scmp.ne.s32.totalorder %s70, %s71
    %p83 = scmp.eq.s32.totalorder %s19, 1
    %p84 = por %p82, %p83
    %p86 = scmp.ne.s32.totalorder %s71, %s85
    %p87 = scmp.eq.s32.totalorder %s19, 0
    %p88 = por %p86, %p87
    %s90 = sadd.s32 %s89, 1
    %p93 = scmp.eq.s32.totalorder %s13, 1
    %p94 = scmp.ne.s32.totalorder %s89, %s91
    %p95 = scmp.eq.s32.totalorder %s13, 0
    %p96 = por %p94, %p95
    %p97 = scmp.ne.s32.totalorder %s89, %s91
    %p98 = scmp.eq.s32.totalorder %s18, 1
    %p99 = por %p97, %p98
    %p100 = scmp.ne.s32.totalorder %s91, %s92
    %p101 = scmp.eq.s32.totalorder %s18, 0
    %p102 = por %p100, %p101
    %p103 = scmp.ne.s32.totalorder %s91, %s92
    %p104 = scmp.eq.s32.totalorder %s19, 1
    %p105 = por %p103, %p104
    %p107 = scmp.ne.s32.totalorder %s92, %s106
    %p108 = scmp.eq.s32.totalorder %s19, 0
    %p109 = por %p107, %p108
    %s111 = sadd.s32 %s110, 1
    %p114 = scmp.eq.s32.totalorder %s13, 1
    %p115 = scmp.ne.s32.totalorder %s110, %s112
    %p116 = scmp.eq.s32.totalorder %s13, 0
    %p117 = por %p115, %p116
    %p118 = scmp.ne.s32.totalorder %s110, %s112
    %p119 = scmp.eq.s32.totalorder %s18, 1
    %p120 = por %p118, %p119
    %p121 = scmp.ne.s32.totalorder %s112, %s113
    %p122 = scmp.eq.s32.totalorder %s18, 0
    %p123 = por %p121, %p122
    %p124 = scmp.ne.s32.totalorder %s112, %s113
    %p125 = scmp.eq.s32.totalorder %s19, 1
    %p126 = por %p124, %p125
    %p128 = scmp.ne.s32.totalorder %s113, %s127
    %p129 = scmp.eq.s32.totalorder %s19, 0
    %p130 = por %p128, %p129
    %s132 = sadd.s32 %s131, 1
    %p135 = scmp.eq.s32.totalorder %s13, 1
    %p136 = scmp.ne.s32.totalorder %s131, %s133
    %p137 = scmp.eq.s32.totalorder %s13, 0
    %p138 = por %p136, %p137
    %p139 = scmp.ne.s32.totalorder %s131, %s133
    %p140 = scmp.eq.s32.totalorder %s18, 1
    %p141 = por %p139, %p140
    %p142 = scmp.ne.s32.totalorder %s133, %s134
    %p143 = scmp.eq.s32.totalorder %s18, 0
    %p144 = por %p142, %p143
    %p145 = scmp.ne.s32.totalorder %s133, %s134
    %p146 = scmp.eq.s32.totalorder %s19, 1
    %p147 = por %p145, %p146
    %p149 = scmp.ne.s32.totalorder %s134, %s148
    %p150 = scmp.eq.s32.totalorder %s19, 0
    %p151 = por %p149, %p150
    %s153 = sadd.s32 %s152, 1
    %p156 = scmp.eq.s32.totalorder %s13, 1
    %p157 = scmp.ne.s32.totalorder %s152, %s154
    %p158 = scmp.eq.s32.totalorder %s13, 0
    %p159 = por %p157, %p158
    %p160 = scmp.ne.s32.totalorder %s152, %s154
    %p161 = scmp.eq.s32.totalorder %s18, 1
    %p162 = por %p160, %p161
    %p163 = scmp.ne.s32.totalorder %s154, %s155
    %p164 = scmp.eq.s32.totalorder %s18, 0
    %p165 = por %p163, %p164
    %p166 = scmp.ne.s32.totalorder %s154, %s155
    %p167 = scmp.eq.s32.totalorder %s19, 1
    %p168 = por %p166, %p167
    %p170 = scmp.ne.s32.totalorder %s155, %s169
    %p171 = scmp.eq.s32.totalorder %s19, 0
    %p172 = por %p170, %p171
    %s173 = ssub.s32 %s13, %s20
    %p174 = scmp.eq.s32.totalorder %s173, 0
    %s176 = sadd.s32 %s175, 1
    %s177 = scalar_select %p174, %s175, %s176
    %p180 = pneg %p174
    %p181 = scmp.eq.s32.totalorder %s13, 1
    %p182 = por %p180, %p181
    %p183 = scmp.ne.s32.totalorder %s175, %s178
    %p184 = scmp.eq.s32.totalorder %s13, 0
    %p185 = por %p183, %p184
    %p186 = scmp.ne.s32.totalorder %s175, %s178
    %p187 = scmp.eq.s32.totalorder %s18, 1
    %p188 = por %p186, %p187
    %p189 = scmp.ne.s32.totalorder %s178, %s179
    %p190 = scmp.eq.s32.totalorder %s18, 0
    %p191 = por %p189, %p190
    %p192 = scmp.ne.s32.totalorder %s178, %s179
    %p193 = scmp.eq.s32.totalorder %s19, 1
    %p194 = por %p192, %p193
    %p196 = scmp.ne.s32.totalorder %s179, %s195
    %p197 = scmp.eq.s32.totalorder %s19, 0
    %p198 = por %p196, %p197
    %p199 = scmp.le.s32.totalorder 1, %s13
    %p200 = scmp.lt.s32.totalorder %s13, 3
    %p201 = pnand %p199, %p200
    %p202 = pneg %p201
    // Predicated region
    $region9: #{residual_block_forward.1} parent=5 // pred_check
      _
    $region10: #{residual_block_forward.1} parent=5 // pred_check_branch
      %204 = sbr.rel (%p201) target = $region12
    $region11: #{residual_block_forward.1} parent=5 // pred_region
      %s205 = ssub.s32 %s13, 1
      // Predicated region
      $region13: #{residual_block_forward.1} parent=11 // pred_check
        %p206 = pneg %p60
      $region14: #{residual_block_forward.1} parent=11 // pred_check_branch
        %208 = sbr.rel (%p206) target = $region16
      $region15: #{residual_block_forward.1} parent=11 // pred_region
        _
      $region16: #{residual_block_forward.1} parent=11 // pred_fallthru
        _
      // Predicated region
      $region17: #{residual_block_forward.1} parent=11 // pred_check
        %p209 = pneg %p81
      $region18: #{residual_block_forward.1} parent=11 // pred_check_branch
        %211 = sbr.rel (%p209) target = $region20
      $region19: #{residual_block_forward.1} parent=11 // pred_region
        _
      $region20: #{residual_block_forward.1} parent=11 // pred_fallthru
        _
      // Predicated region
      $region21: #{residual_block_forward.1} parent=11 // pred_check
        %p212 = pneg %p102
      $region22: #{residual_block_forward.1} parent=11 // pred_check_branch
        %214 = sbr.rel (%p212) target = $region24
      $region23: #{residual_block_forward.1} parent=11 // pred_region
        _
      $region24: #{residual_block_forward.1} parent=11 // pred_fallthru
        _
      // Predicated region
      $region25: #{residual_block_forward.1} parent=11 // pred_check
        %p215 = pneg %p123
      $region26: #{residual_block_forward.1} parent=11 // pred_check_branch
        %217 = sbr.rel (%p215) target = $region28
      $region27: #{residual_block_forward.1} parent=11 // pred_region
        _
      $region28: #{residual_block_forward.1} parent=11 // pred_fallthru
        _
      // Predicated region
      $region29: #{residual_block_forward.1} parent=11 // pred_check
        %p218 = pneg %p144
      $region30: #{residual_block_forward.1} parent=11 // pred_check_branch
        %220 = sbr.rel (%p218) target = $region32
      $region31: #{residual_block_forward.1} parent=11 // pred_region
        _
      $region32: #{residual_block_forward.1} parent=11 // pred_fallthru
        _
      // Predicated region
      $region33: #{residual_block_forward.1} parent=11 // pred_check
        %p221 = pneg %p165
      $region34: #{residual_block_forward.1} parent=11 // pred_check_branch
        %223 = sbr.rel (%p221) target = $region36
      $region35: #{residual_block_forward.1} parent=11 // pred_region
        _
      $region36: #{residual_block_forward.1} parent=11 // pred_fallthru
        _
    $region12: #{residual_block_forward.1} parent=5 // pred_fallthru
      _
    %p224 = scmp.lt.s32.totalorder %s13, 2
    // Predicated region
    $region37: #{residual_block_forward.1} parent=5 // pred_check
      %p225 = pneg %p224
    $region38: #{residual_block_forward.1} parent=5 // pred_check_branch
      %227 = sbr.rel (%p225) target = $region40
    $region39: #{residual_block_forward.1} parent=5 // pred_region
      // Predicated region
      $region41: #{residual_block_forward.1} parent=39 // pred_check
        %p228 = pneg %p33
      $region42: #{residual_block_forward.1} parent=39 // pred_check_branch
        %230 = sbr.rel (%p228) target = $region44
      $region43: #{residual_block_forward.1} parent=39 // pred_region
        %p231 = scmp.lt.s32.totalorder %s13, 1
        %s232 = scalar_select %p231, %s13, 1
        %s233 = smul.addr %s232, 72
        %s234 = smul.addr %s233, 4
        %s235 = scalar_lea.vmem %s0, %s234
      $region44: #{residual_block_forward.1} parent=39 // pred_fallthru
        _
    $region40: #{residual_block_forward.1} parent=5 // pred_fallthru
      _
    %p236 = scmp.le.s32.totalorder 1, %s13
    %p237 = scmp.lt.s32.totalorder %s13, 3
    %p238 = pnand %p236, %p237
    %p239 = pneg %p238
    // Predicated region
    $region45: #{residual_block_forward.1} parent=5 // pred_check
      _
    $region46: #{residual_block_forward.1} parent=5 // pred_check_branch
      %241 = sbr.rel (%p238) target = $region48
    $region47: #{residual_block_forward.1} parent=5 // pred_region
      %s242 = ssub.s32 %s13, 1
      %p243 = scmp.lt.s32.totalorder %s18, 1
      %s244 = scalar_select %p243, %s18, 1
      %s245 = smul.addr %s244, 72
      %s246 = smul.addr %s245, 4
      %s247 = scalar_lea.vmem %s0, %s246
      %p248 = pneg %p39
      %p249 = pneg %p36
      %p250 = pneg %p60
      %p251 = pneg %p57
      %p252 = pneg %p81
      %p253 = pneg %p78
      %p254 = pneg %p102
      %p255 = pneg %p99
      %p256 = pneg %p123
      %p257 = pneg %p120
      %p258 = pneg %p144
      %p259 = pneg %p141
      %p260 = pneg %p165
      %p261 = pneg %p162
      %p262 = pneg %p191
      %p263 = pneg %p188
      %p264 = scmp.lt.s32.totalorder %s18, 1
      %s265 = scalar_select %p264, %s18, 1
      %s266 = smul.addr %s265, 8
      %s267 = smul.addr %s266, 8
      %s268 = scalar_lea.vmem %s7, %s267
      %p269 = scmp.lt.s32.totalorder %s18, 1
      %s270 = scalar_select %p269, %s18, 1
      %s271 = smul.addr %s270, 72
      %s272 = smul.addr %s271, 4
      %s273 = scalar_lea.vmem %s0, %s272
      %p274 = scmp.lt.s32.totalorder %s18, 1
      %s275 = scalar_select %p274, %s18, 1
      %s276 = smul.addr %s275, 8
      %s277 = smul.addr %s276, 8
      %s278 = scalar_lea.vmem %s7, %s277
      %vm280 = vcmask 60416
      %281 = vst.msk [vmem:[#allocation2] sm:$0xf] %vm280, 0
      %vm282 = vcmask 57344
      %283 = vst.msk [vmem:[#allocation2 + $0x4] sm:$0x1] %vm282, 0
      %284 = vst.msk [vmem:[#allocation2 + $0x8] sm:$0xf] %vm280, 0
      %285 = vst.msk [vmem:[#allocation2 + $0xc] sm:$0x1] %vm282, 0
      %286 = vst.msk [vmem:[#allocation2 + $0x10] sm:$0xf] %vm280, 0
      %287 = vst.msk [vmem:[#allocation2 + $0x14] sm:$0x1] %vm282, 0
      %288 = vst.msk [vmem:[#allocation2 + $0x18] sm:$0xf] %vm280, 0
      %289 = vst.msk [vmem:[#allocation2 + $0x1c] sm:$0x1] %vm282, 0
      %290 = vst.msk [vmem:[#allocation2 + $0x20] sm:$0xf] %vm280, 0
      %291 = vst.msk [vmem:[#allocation2 + $0x24] sm:$0x1] %vm282, 0
      %292 = vst.msk [vmem:[#allocation2 + $0x28] sm:$0xf] %vm280, 0
      %293 = vst.msk [vmem:[#allocation2 + $0x2c] sm:$0x1] %vm282, 0
      %294 = vst.msk [vmem:[#allocation2 + $0x30] sm:$0xf] %vm280, 0
      %295 = vst.msk [vmem:[#allocation2 + $0x34] sm:$0x1] %vm282, 0
      %296 = vst.msk [vmem:[#allocation2 + $0x38] sm:$0xf] %vm280, 0
      %297 = vst.msk [vmem:[#allocation2 + $0x3c] sm:$0x1] %vm282, 0
      %298 = vst.msk [vmem:[#allocation2 + $0x40] sm:$0xf] %vm280, 0
      %299 = vst.msk [vmem:[#allocation2 + $0x44] sm:$0x1] %vm282, 0
      %300 = vst.msk [vmem:[#allocation2 + $0x48] sm:$0xf] %vm280, 0
      %301 = vst.msk [vmem:[#allocation2 + $0x4c] sm:$0x1] %vm282, 0
      loop: start=0, step=1, limit=8
      $region49: #{residual_block_forward.1} parent=47 // loop_pre_header
        _
      $region50: #{residual_block_forward.1} parent=47 // loop_header
        %s303 = sphi 0, %s307
        %p304 = scmp.ge.s32.totalorder %s303, 8
      $region51: #{residual_block_forward.1} parent=47 // loop_header_branch
        %306 = sbr.rel (%p304) target = $region55
      $region52: #{residual_block_forward.1} parent=47 // loop_body
        %s308 = smul.u32 %s303, 2
        %s309 = smul.u32 %s308, 4
        %s310 = smul.addr %s309, 4
        %s311 = scalar_lea.vmem %s273, %s310
        %v312 = vld [vmem:[%s311] sm:$0xf]
        %s313 = sadd.s32 2, %s309
        %s314 = smul.addr %s313, 4
        %s315 = scalar_lea.vmem %s273, %s314
        %v316 = vld [vmem:[%s315] sm:$0xf]
        %v317 = vld [vmem:[%s311 + $0x4] sm:$0x1]
        %s318 = sadd.s32 %s308, 1
        %s319 = smul.u32 %s318, 4
        %s320 = smul.addr %s319, 4
        %s321 = scalar_lea.vmem %s273, %s320
        %v322 = vld [vmem:[%s321] sm:$0xf]
        %s323 = sadd.s32 2, %s319
        %s324 = smul.addr %s323, 4
        %s325 = scalar_lea.vmem %s273, %s324
        %v326 = vld [vmem:[%s325] sm:$0xf]
        %v327 = vld [vmem:[%s321 + $0x4] sm:$0x1]
        %s328 = sadd.s32 %s308, 2
        %s329 = smul.u32 %s328, 4
        %s330 = smul.addr %s329, 4
        %s331 = scalar_lea.vmem %s273, %s330
        %v332 = vld [vmem:[%s331] sm:$0xf]
        %s333 = sadd.s32 2, %s329
        %s334 = smul.addr %s333, 4
        %s335 = scalar_lea.vmem %s273, %s334
        %v336 = vld [vmem:[%s335] sm:$0xf]
        %v337 = vld [vmem:[%s331 + $0x4] sm:$0x1]
        %v339 = vunpack.c.l.b16 %v316
        %v340 = vpack.c.b16 %v339, %v339
        %341 = vrot.lane.b32.xlu0 %v340, 4
        %v342 = vpop.permute.xlu0 %341
        %v345 = vunpack.c.l.b16 %v312
        %v346 = vunpack.c.l.b16 %v317
        %v347 = vpack.c.b16 %v346, %v345
        %v349 = vshrl.u32 %v347, 16
        %v351 = vshll.u32 %v347, 16
        %v353 = vrot.slane %v351, 1
        %v354 = vor.u32 %v349, %v353
        %355 = vrot.lane.b32.xlu0 %v354, 8
        %v356 = vpop.permute.xlu0 %355
        %v358 = vunpack.c.l.b16 %v322
        %v359 = vpack.c.b16 %v358, %v358
        %360 = vrot.lane.b32.xlu0 %v359, 12
        %v361 = vpop.permute.xlu0 %360
        %v363 = vunpack.c.l.b16 %v326
        %v364 = vpack.c.b16 %v363, %v363
        %365 = vrot.lane.b32.xlu0 %v364, 16
        %v366 = vpop.permute.xlu0 %365
        %v368 = vunpack.c.l.b16 %v327
        %v369 = vpack.c.b16 %v368, %v358
        %v371 = vshrl.u32 %v369, 16
        %v373 = vshll.u32 %v369, 16
        %v375 = vrot.slane %v373, 1
        %v376 = vor.u32 %v371, %v375
        %377 = vrot.lane.b32.xlu0 %v376, 20
        %v378 = vpop.permute.xlu0 %377
        %v380 = vunpack.c.l.b16 %v332
        %v381 = vpack.c.b16 %v380, %v380
        %382 = vrot.lane.b32.xlu0 %v381, 24
        %v383 = vpop.permute.xlu0 %382
        %v385 = vunpack.c.l.b16 %v336
        %v386 = vpack.c.b16 %v385, %v385
        %387 = vrot.lane.b32.xlu0 %v386, 28
        %v388 = vpop.permute.xlu0 %387
        %v390 = vunpack.c.l.b16 %v337
        %v391 = vpack.c.b16 %v390, %v380
        %v393 = vshrl.u32 %v391, 16
        %v395 = vshll.u32 %v391, 16
        %v397 = vrot.slane %v395, 1
        %v398 = vor.u32 %v393, %v397
        %399 = vrot.lane.b32.xlu0 %v398, 32
        %v400 = vpop.permute.xlu0 %399
        %vm401 = vcmask 31744
        %v404 = vsel %vm401, %v312, %v342
        %vm405 = vcmask 64512
        %v407 = vsel %vm405, %v404, %v356
        %vm408 = vcmask 97280
        %v410 = vsel %vm408, %v407, %v361
        %vm411 = vcmask 130048
        %v413 = vsel %vm411, %v410, %v366
        %vm414 = vcmask 162816
        %v416 = vsel %vm414, %v413, %v378
        %vm417 = vcmask 195584
        %v419 = vsel %vm417, %v416, %v383
        %vm420 = vcmask 228352
        %v422 = vsel %vm420, %v419, %v388
        %vm423 = vcmask 261120
        %v425 = vsel %vm423, %v422, %v400
        %v426 = vld [vmem:[%s1] sm:$0xf]
        %v427 = vld [vmem:[%s1 + $0x4] sm:$0xf]
        %v428 = vld [vmem:[%s1 + $0x8] sm:$0xf]
        %v429 = vld [vmem:[%s1 + $0xc] sm:$0xf]
        %v430 = vld [vmem:[%s1 + $0x10] sm:$0x3]
        %v431 = vld [vmem:[%s2] sm:$0x1]
        %v433 = vlaneseq
        %v434 = vshrl.u32 %v433, 7
        %v435 = vsub.s32 0, %v434
        %v436 = vrot.slane %v431, %v435
        %v443 = vunpack.c.l.b16 %v426
        %v444 = vunpack.c.l.b16 %v427
        %v445 = vunpack.c.l.b16 %v428
        %v446 = vunpack.c.l.b16 %v429
        %v447 = vunpack.c.l.b16 %v430
        %v448 = vpack.c.b16 %v444, %v443
        %v449 = vpack.c.b16 %v446, %v445
        %v450 = vpack.c.b16 %v447, %v447
        %vm453 = vcmask 293888
        %v454 = vsel %vm453, %v425, 0
        %vm456 = vcmask 1041408
        %v458 = vsel %vm456, %v450, 0
        %460 = vmatprep.subr.bf16.mxu0 0
        %461 = vmatpush1.bf16.msra.mxu0 %v448
        %462 = vmatprep.subr.bf16.mxu0 0
        %463 = vmatpush1.bf16.msra.mxu0 %v449
        %464 = vmatprep.subr.bf16.mxu0 0
        %465 = vmatpush1.bf16.msra.mxu0 %v458
        %466 = vmatprep.subr.bf16.mxu0 0
        %467 = vmatpush1.bf16.msra.mxu0 0
        %468 = vmatprep.subr.bf16.mxu0 0
        %469 = vmatpush1.bf16.msra.mxu0 0
        %470 = vmatprep.subr.bf16.mxu0 0
        %471 = vmatpush1.bf16.msra.mxu0 0
        %472 = vmatprep.subr.bf16.mxu0 0
        %473 = vmatpush1.bf16.msra.mxu0 0
        %474 = vmatprep.subr.bf16.mxu0 0
        %475 = vmatpush1.bf16.msra.mxu0 0
        %476 = vmatprep.subr.bf16.mxu0 0
        %477 = vmatpush1.bf16.msra.mxu0 0
        %478 = vmatprep.subr.bf16.mxu0 0
        %479 = vmatpush1.bf16.msra.mxu0 0
        %480 = vmatprep.subr.bf16.mxu0 0
        %481 = vmatpush1.bf16.msra.mxu0 0
        %482 = vmatprep.subr.bf16.mxu0 0
        %483 = vmatpush1.bf16.msra.mxu0 0
        %484 = vmatprep.subr.bf16.mxu0 0
        %485 = vmatpush1.bf16.msra.mxu0 0
        %486 = vmatprep.subr.bf16.mxu0 0
        %487 = vmatpush1.bf16.msra.mxu0 0
        %488 = vmatprep.subr.bf16.mxu0 0
        %489 = vmatpush1.bf16.msra.mxu0 0
        %490 = vmatprep.subr.bf16.mxu0 0
        %491 = vmatpush1.bf16.msra.mxu0 0
        %492 = vmatprep.mubr.bf16.mxu0 0
        %493 = vmatmul.mubr.bf16.gmra.mrb[0].mxu0 %v454
        %v494 = vpop.f32.mrb[0].mxu0
        %v495 = vadd.f32 %v436, %v494
        %v496 = vpop.f32.mrb[0].mxu0
        %v497 = vpop.f32.mrb[0].mxu0
        %v498 = vpop.f32.mrb[0].mxu0
        %499 = vdwg.mxu0
        %v500 = vmax.f32 %v495, 0.0
        %v501 = vpack.c.bf16 %v500, %v500
        %s502 = sadd.s32 %s303, 1
        %v504 = vunpack.c.l.b16 %v501
        %v505 = vpack.c.b16 %v504, %v504
        %v507 = vshrl.u32 %v505, 16
        %v509 = vrot.slane %v507, 7
        %v510 = vshll.u32 %v505, 16
        %v512 = vor.u32 %v509, %v510
        %v513 = vrot.slane %v509, 4
        %s516 = smul.u32 %s502, 2
        %s517 = smul.addr %s516, 4
        %s518 = scalar_lea.vmem [#allocation2], %s517
        %vm519 = vcmask 60416
        %vm520 = vsmask.f32 7938
        %vm521 = vmand %vm519, %vm520
        %v522 = vld [vmem:[%s518] sm:$0xf]
        %v523 = vsel %vm521, %v512, %v522
        %524 = vst [vmem:[%s518] sm:$0xf] %v523
        %vm525 = vcmask 57344
        %vm526 = vsmask.f32 256
        %vm527 = vmand %vm525, %vm526
        %v528 = vld [vmem:[%s518 + $0x4] sm:$0x1]
        %v529 = vsel %vm527, %v513, %v528
        %530 = vst [vmem:[%s518 + $0x4] sm:$0x1] %v529
      $region53: #{residual_block_forward.1} parent=47 // loop_footer
        %s307 = sadd.s32 1, %s303
      $region54: #{residual_block_forward.1} parent=47 // loop_footer_branch
        %302 = sbr.rel target = $region50
      $region55: #{residual_block_forward.1} parent=47 // loop_exit
        _
      loop: start=0, step=1, limit=8
      $region56: #{residual_block_forward.1} parent=47 // loop_pre_header
        _
      $region57: #{residual_block_forward.1} parent=47 // loop_header
        %s532 = sphi 0, %s536
        %p533 = scmp.ge.s32.totalorder %s532, 8
      $region58: #{residual_block_forward.1} parent=47 // loop_header_branch
        %535 = sbr.rel (%p533) target = $region62
      $region59: #{residual_block_forward.1} parent=47 // loop_body
        %s537 = smul.u32 %s532, 2
        %s538 = smul.addr %s537, 4
        %s539 = scalar_lea.vmem [#allocation2], %s538
        %v540 = vld [vmem:[%s539] sm:$0xf]
        %v541 = vld [vmem:[%s539 + $0x4] sm:$0x1]
        %v542 = vld [vmem:[%s539] sm:$0xe]
        %s543 = sadd.s32 %s532, 1
        %s544 = smul.u32 %s543, 2
        %s545 = smul.addr %s544, 4
        %s546 = scalar_lea.vmem [#allocation2], %s545
        %v547 = vld [vmem:[%s546] sm:$0xf]
        %v548 = vld [vmem:[%s546 + $0x4] sm:$0x1]
        %v549 = vld [vmem:[%s546] sm:$0xe]
        %s550 = sadd.s32 %s532, 2
        %s551 = smul.u32 %s550, 2
        %s552 = smul.addr %s551, 4
        %s553 = scalar_lea.vmem [#allocation2], %s552
        %v554 = vld [vmem:[%s553] sm:$0xf]
        %v555 = vld [vmem:[%s553 + $0x4] sm:$0x1]
        %v556 = vld [vmem:[%s553] sm:$0xe]
        %v559 = vunpack.c.l.b16 %v540
        %v560 = vunpack.c.l.b16 %v541
        %v561 = vpack.c.b16 %v560, %v559
        %v563 = vshrl.u32 %v561, 16
        %v565 = vshll.u32 %v561, 16
        %v567 = vrot.slane %v565, 1
        %v568 = vor.u32 %v563, %v567
        %569 = vrot.lane.b32.xlu0 %v568, 8
        %v570 = vpop.permute.xlu0 %569
        %v572 = vunpack.c.l.b16 %v542
        %v573 = vpack.c.b16 %v560, %v572
        %v574 = vrot.slane %v573, 1
        %575 = vrot.lane.b32.xlu0 %v574, 16
        %v576 = vpop.permute.xlu0 %575
        %v578 = vunpack.c.l.b16 %v547
        %v579 = vpack.c.b16 %v578, %v578
        %580 = vrot.lane.b32.xlu0 %v579, 24
        %v581 = vpop.permute.xlu0 %580
        %v583 = vunpack.c.l.b16 %v548
        %v584 = vpack.c.b16 %v583, %v578
        %v586 = vshrl.u32 %v584, 16
        %v588 = vshll.u32 %v584, 16
        %v590 = vrot.slane %v588, 1
        %v591 = vor.u32 %v586, %v590
        %592 = vrot.lane.b32.xlu0 %v591, 32
        %v593 = vpop.permute.xlu0 %592
        %v595 = vunpack.c.l.b16 %v549
        %v596 = vpack.c.b16 %v583, %v595
        %v597 = vrot.slane %v596, 1
        %598 = vrot.lane.b32.xlu0 %v597, 40
        %v599 = vpop.permute.xlu0 %598
        %v601 = vunpack.c.l.b16 %v554
        %v602 = vpack.c.b16 %v601, %v601
        %603 = vrot.lane.b32.xlu0 %v602, 48
        %v604 = vpop.permute.xlu0 %603
        %v606 = vunpack.c.l.b16 %v555
        %v607 = vpack.c.b16 %v606, %v601
        %v609 = vshrl.u32 %v607, 16
        %v611 = vshll.u32 %v607, 16
        %v613 = vrot.slane %v611, 1
        %v614 = vor.u32 %v609, %v613
        %615 = vrot.lane.b32.xlu0 %v614, 56
        %v616 = vpop.permute.xlu0 %615
        %v618 = vunpack.c.l.b16 %v556
        %v619 = vpack.c.b16 %v606, %v618
        %v620 = vrot.slane %v619, 1
        %621 = vrot.lane.b32.xlu0 %v620, 64
        %v622 = vpop.permute.xlu0 %621
        %vm623 = vcmask 64512
        %v626 = vsel %vm623, %v540, %v570
        %vm627 = vcmask 130048
        %v629 = vsel %vm627, %v626, %v576
        %vm630 = vcmask 195584
        %v632 = vsel %vm630, %v629, %v581
        %vm633 = vcmask 261120
        %v635 = vsel %vm633, %v632, %v593
        %vm636 = vcmask 326656
        %v638 = vsel %vm636, %v635, %v599
        %vm639 = vcmask 392192
        %v641 = vsel %vm639, %v638, %v604
        %vm642 = vcmask 457728
        %v644 = vsel %vm642, %v641, %v616
        %vm645 = vcmask 523264
        %v647 = vsel %vm645, %v644, %v622
        %v648 = vld [vmem:[%s3] sm:$0xf]
        %v649 = vld [vmem:[%s3 + $0x4] sm:$0xf]
        %v650 = vld [vmem:[%s3 + $0x8] sm:$0xf]
        %v651 = vld [vmem:[%s3 + $0xc] sm:$0xf]
        %v652 = vld [vmem:[%s3 + $0x10] sm:$0xf]
        %v653 = vld [vmem:[%s3 + $0x14] sm:$0xf]
        %v654 = vld [vmem:[%s3 + $0x18] sm:$0xf]
        %v655 = vld [vmem:[%s3 + $0x1c] sm:$0xf]
        %v656 = vld [vmem:[%s3 + $0x20] sm:$0xf]
        %v657 = vld [vmem:[%s4] sm:$0x1]
        %v659 = vlaneseq
        %v660 = vshrl.u32 %v659, 7
        %v661 = vsub.s32 0, %v660
        %v662 = vrot.slane %v657, %v661
        %v673 = vunpack.c.l.b16 %v648
        %v674 = vunpack.c.l.b16 %v649
        %v675 = vunpack.c.l.b16 %v650
        %v676 = vunpack.c.l.b16 %v651
        %v677 = vunpack.c.l.b16 %v652
        %v678 = vunpack.c.l.b16 %v653
        %v679 = vunpack.c.l.b16 %v654
        %v680 = vunpack.c.l.b16 %v655
        %v681 = vunpack.c.l.b16 %v656
        %v682 = vpack.c.b16 %v674, %v673
        %v683 = vpack.c.b16 %v676, %v675
        %v684 = vpack.c.b16 %v678, %v677
        %v685 = vpack.c.b16 %v680, %v679
        %v686 = vpack.c.b16 %v681, %v681
        %vm691 = vcmask 588800
        %v692 = vsel %vm691, %v647, 0
        %vm694 = vcmask 1043456
        %v696 = vsel %vm694, %v686, 0
        %698 = vmatprep.subr.bf16.mxu0 0
        %699 = vmatpush1.bf16.msra.mxu0 %v682
        %700 = vmatprep.subr.bf16.mxu0 0
        %701 = vmatpush1.bf16.msra.mxu0 %v683
        %702 = vmatprep.subr.bf16.mxu0 0
        %703 = vmatpush1.bf16.msra.mxu0 %v684
        %704 = vmatprep.subr.bf16.mxu0 0
        %705 = vmatpush1.bf16.msra.mxu0 %v685
        %706 = vmatprep.subr.bf16.mxu0 0
        %707 = vmatpush1.bf16.msra.mxu0 %v696
        %708 = vmatprep.subr.bf16.mxu0 0
        %709 = vmatpush1.bf16.msra.mxu0 0
        %710 = vmatprep.subr.bf16.mxu0 0
        %711 = vmatpush1.bf16.msra.mxu0 0
        %712 = vmatprep.subr.bf16.mxu0 0
        %713 = vmatpush1.bf16.msra.mxu0 0
        %714 = vmatprep.subr.bf16.mxu0 0
        %715 = vmatpush1.bf16.msra.mxu0 0
        %716 = vmatprep.subr.bf16.mxu0 0
        %717 = vmatpush1.bf16.msra.mxu0 0
        %718 = vmatprep.subr.bf16.mxu0 0
        %719 = vmatpush1.bf16.msra.mxu0 0
        %720 = vmatprep.subr.bf16.mxu0 0
        %721 = vmatpush1.bf16.msra.mxu0 0
        %722 = vmatprep.subr.bf16.mxu0 0
        %723 = vmatpush1.bf16.msra.mxu0 0
        %724 = vmatprep.subr.bf16.mxu0 0
        %725 = vmatpush1.bf16.msra.mxu0 0
        %726 = vmatprep.subr.bf16.mxu0 0
        %727 = vmatpush1.bf16.msra.mxu0 0
        %728 = vmatprep.subr.bf16.mxu0 0
        %729 = vmatpush1.bf16.msra.mxu0 0
        %730 = vmatprep.mubr.bf16.mxu0 0
        %731 = vmatmul.mubr.bf16.gmra.mrb[0].mxu0 %v692
        %v732 = vpop.f32.mrb[0].mxu0
        %v733 = vadd.f32 %v662, %v732
        %v734 = vpop.f32.mrb[0].mxu0
        %v735 = vpop.f32.mrb[0].mxu0
        %v736 = vpop.f32.mrb[0].mxu0
        %737 = vdwg.mxu0
        %s738 = sadd.s32 %s537, 1
        %s739 = smul.u32 %s738, 4
        %s740 = sadd.s32 2, %s739
        %s741 = smul.addr %s740, 4
        %s742 = scalar_lea.vmem %s273, %s741
        %v743 = vld [vmem:[%s742] sm:$0xf]
        %v744 = vld [vmem:[%s5] sm:$0x3]
        %v745 = vld [vmem:[%s6] sm:$0x1]
        %v747 = vlaneseq
        %v748 = vshrl.u32 %v747, 7
        %v749 = vsub.s32 0, %v748
        %v750 = vrot.slane %v745, %v749
        %vm752 = vcmask 31744
        %v754 = vsel %vm752, %v743, 0
        %vm756 = vcmask 1041408
        %v758 = vsel %vm756, %v744, 0
        %760 = vmatprep.subr.bf16.mxu0 0
        %761 = vmatpush1.bf16.msra.mxu0 %v758
        %762 = vmatprep.subr.bf16.mxu0 0
        %763 = vmatpush1.bf16.msra.mxu0 0
        %764 = vmatprep.subr.bf16.mxu0 0
        %765 = vmatpush1.bf16.msra.mxu0 0
        %766 = vmatprep.subr.bf16.mxu0 0
        %767 = vmatpush1.bf16.msra.mxu0 0
        %768 = vmatprep.subr.bf16.mxu0 0
        %769 = vmatpush1.bf16.msra.mxu0 0
        %770 = vmatprep.subr.bf16.mxu0 0
        %771 = vmatpush1.bf16.msra.mxu0 0
        %772 = vmatprep.subr.bf16.mxu0 0
        %773 = vmatpush1.bf16.msra.mxu0 0
        %774 = vmatprep.subr.bf16.mxu0 0
        %775 = vmatpush1.bf16.msra.mxu0 0
        %776 = vmatprep.subr.bf16.mxu0 0
        %777 = vmatpush1.bf16.msra.mxu0 0
        %778 = vmatprep.subr.bf16.mxu0 0
        %779 = vmatpush1.bf16.msra.mxu0 0
        %780 = vmatprep.subr.bf16.mxu0 0
        %781 = vmatpush1.bf16.msra.mxu0 0
        %782 = vmatprep.subr.bf16.mxu0 0
        %783 = vmatpush1.bf16.msra.mxu0 0
        %784 = vmatprep.subr.bf16.mxu0 0
        %785 = vmatpush1.bf16.msra.mxu0 0
        %786 = vmatprep.subr.bf16.mxu0 0
        %787 = vmatpush1.bf16.msra.mxu0 0
        %788 = vmatprep.subr.bf16.mxu0 0
        %789 = vmatpush1.bf16.msra.mxu0 0
        %790 = vmatprep.subr.bf16.mxu0 0
        %791 = vmatpush1.bf16.msra.mxu0 0
        %792 = vmatprep.mubr.bf16.mxu0 0
        %793 = vmatmul.mubr.bf16.gmra.mrb[0].mxu0 %v754
        %v794 = vpop.f32.mrb[0].mxu0
        %v795 = vadd.f32 %v750, %v794
        %v796 = vpop.f32.mrb[0].mxu0
        %v797 = vpop.f32.mrb[0].mxu0
        %v798 = vpop.f32.mrb[0].mxu0
        %799 = vdwg.mxu0
        %v800 = vadd.f32 %v733, %v795
        %v801 = vmax.f32 %v800, 0.0
        %s802 = smul.u32 %s532, 8
        %s803 = scalar_lea.vmem %s278, %s802
        %804 = vst.msk [vmem:[%s803] sm:$0xff] %vm623, %v801
      $region60: #{residual_block_forward.1} parent=47 // loop_footer
        %s536 = sadd.s32 1, %s532
      $region61: #{residual_block_forward.1} parent=47 // loop_footer_branch
        %531 = sbr.rel target = $region57
      $region62: #{residual_block_forward.1} parent=47 // loop_exit
        _
      %p805 = scmp.lt.s32.totalorder %s18, 1
      %s806 = scalar_select %p805, %s18, 1
      %s807 = smul.addr %s806, 8
      %s808 = smul.addr %s807, 8
      %s809 = scalar_lea.vmem %s7, %s808
      // Predicated region
      $region63: #{residual_block_forward.1} parent=47 // pred_check
        %p810 = pneg %p188
      $region64: #{residual_block_forward.1} parent=47 // pred_check_branch
        %812 = sbr.rel (%p810) target = $region66
      $region65: #{residual_block_forward.1} parent=47 // pred_region
        _
      $region66: #{residual_block_forward.1} parent=47 // pred_fallthru
        _
    $region48: #{residual_block_forward.1} parent=5 // pred_fallthru
      _
    %p813 = scmp.le.s32.totalorder 2, %s13
    // Predicated region
    $region67: #{residual_block_forward.1} parent=5 // pred_check
      %p814 = pneg %p813
    $region68: #{residual_block_forward.1} parent=5 // pred_check_branch
      %816 = sbr.rel (%p814) target = $region70
    $region69: #{residual_block_forward.1} parent=5 // pred_region
      %s817 = ssub.s32 %s13, 2
      // Predicated region
      $region71: #{residual_block_forward.1} parent=69 // pred_check
        %p818 = pneg %p194
      $region72: #{residual_block_forward.1} parent=69 // pred_check_branch
        %820 = sbr.rel (%p818) target = $region74
      $region73: #{residual_block_forward.1} parent=69 // pred_region
        %p821 = scmp.lt.s32.totalorder %s19, 1
        %s822 = scalar_select %p821, %s19, 1
        %s823 = smul.addr %s822, 8
        %s824 = smul.addr %s823, 8
        %s825 = scalar_lea.vmem %s7, %s824
      $region74: #{residual_block_forward.1} parent=69 // pred_fallthru
        _
    $region70: #{residual_block_forward.1} parent=5 // pred_fallthru
      _
  $region6: #{residual_block_forward.1} parent=0 // loop_footer
    %s17 = sadd.s32 1, %s13
  $region7: #{residual_block_forward.1} parent=0 // loop_footer_branch
    %12 = sbr.rel target = $region3
  $region8: #{residual_block_forward.1} parent=0 // loop_exit
    _

</llo_original>
